<compile_context>
chip_gen: v7x
topology: tpu7x:2x2x1
jax: 0.10.0
libtpu: 0.0.40
codegen_flags: <defaults>
</compile_context>

<pallas_src>
import functools

import jax
import jax.numpy as jnp
from jax.experimental import pallas as pl
from jax.experimental.pallas import tpu as pltpu


def _round_up(x, m):
    return (x + m - 1) // m * m


def _cdiv(a, b):
    return (a + b - 1) // b


def _chip_info():
    """Best-effort (vmem_capacity_bytes, mxu_lane_width) with safe fallbacks."""
    vmem_cap = 64 * 1024 * 1024                       # v7x-sized fallback, safe everywhere
    try:
        vmem_cap = int(pltpu.get_tpu_info().vmem_capacity_bytes)
    except Exception:
        pass
    mxu_n = 256                                       # v6e / v7x MXU output width
    try:
        kind = jax.devices()[0].device_kind.lower()
        if any(tag in kind for tag in ("v2", "v3", "v4", "v5 lite", "v5e", "v5lite")):
            mxu_n = 128
    except Exception:
        pass
    return vmem_cap, mxu_n


def _taps(win_ref, offsets, tile_t, s):
    """Strided in-VMEM tap reads: tap at `off` reads window rows off, off+s, ..."""
    reads = []
    for off in offsets:
        if s == 1:
            reads.append(win_ref[pl.ds(off, tile_t), :])
        else:
            reads.append(win_ref[pl.ds(off, tile_t, stride=s), :])
    return reads


def _lr_fused_kernel(a_ref, h_ref, w_ref, o_ref, win_ref, *, blk_a, k, s, tile_t):
    # Assemble the shared left/right window (block rows + small halo) in VMEM.
    win_ref[:blk_a, :] = a_ref[...][0]
    win_ref[blk_a:, :] = h_ref[...][0, 0]
    # In-kernel im2col: left tap m of output row r reads win[r*s + m],
    # right tap m reads win[r*s + k + 1 + m].
    offs = list(range(k)) + [k + 1 + m for m in range(k)]
    lhs = jnp.concatenate(_taps(win_ref, offs, tile_t, s), axis=-1)    # (tile_t, 2kc)
    out = jnp.dot(lhs, w_ref[...], preferred_element_type=jnp.float32)
    o_ref[...] = out.astype(o_ref.dtype)[None]


def _lr_split_kernel(a_ref, h_ref, wl_ref, wr_ref, o_ref, win_ref, *,
                     blk_a, k, s, tile_t):
    win_ref[:blk_a, :] = a_ref[...][0]
    win_ref[blk_a:, :] = h_ref[...][0, 0]
    left = jnp.concatenate(_taps(win_ref, list(range(k)), tile_t, s), axis=-1)
    right = jnp.concatenate(
        _taps(win_ref, [k + 1 + m for m in range(k)], tile_t, s), axis=-1)
    lo = jnp.dot(left, wl_ref[...], preferred_element_type=jnp.float32)
    ro = jnp.dot(right, wr_ref[...], preferred_element_type=jnp.float32)
    o_ref[...] = jnp.concatenate([lo, ro], axis=-1).astype(o_ref.dtype)[None]


def left_right_feature_extractor(x, w_left, w_right, *, stride, kernel_size,
                                 compute_dtype=jnp.bfloat16, block_t=None):
    """x: (b, c, t); w_*: (c_out, c_in, k) torch Conv1d layout.  Returns (b, t_out, 2c)."""
    b, c, t = x.shape
    k, s = kernel_size, stride
    t_out = (t - 1) // s + 1
    out_dtype = x.dtype
    cdt = jnp.dtype(compute_dtype if compute_dtype is not None else x.dtype)
    item = cdt.itemsize
    out_item = jnp.dtype(out_dtype).itemsize
    kc = k * c

    vmem_cap, mxu_n = _chip_info()

    # Rows past each tile's (tile_t * s)-row block that the taps still touch.
    halo = _round_up(max(2 * k + 1 - s, 1), 16)

    # Fuse L/R into one block-diagonal dot only when it fills the MXU
    # (2c <= 256 on v6e/v7x, <= 128 on v5e); pad N to >=128 lanes -> unmasked stores.
    fuse_lr = 2 * c <= mxu_n
    n_out = max(2 * c, 128) if fuse_lr else 2 * c
    w_bytes = (2 * kc * n_out if fuse_lr else 2 * kc * c) * item

    # ---- tile_t from an honest, chip-aware VMEM budget ----
    budget = min(vmem_cap // 3, 28 * 1024 * 1024)
    block_cap = 1024 if vmem_cap >= 96 * 1024 * 1024 else 512
    # per output row: input block (2 bufs) + window copy + im2col temp
    #                 + output block (2 bufs) + f32 matmul result
    per_row = item * (3 * s * c + 2 * kc) + (2 * out_item + 4) * n_out
    fixed = 2 * w_bytes + 3 * halo * c * item + (1 << 20)  # dbl-buffered weights + halo + slack
    tile_t = (budget - fixed) // max(per_row, 1)
    tile_t = min(tile_t, block_cap, _round_up(t_out, 16))
    if block_t is not None:
        tile_t = min(tile_t, block_t)
    if b < 4:  # keep >=2 pipelined grid steps per TensorCore on dual-core parts
        tile_t = min(tile_t, _round_up(_cdiv(t_out, _cdiv(4, b)), 16))
    tile_lo = max(16, _round_up(_cdiv(halo, s), 16), _round_up(_cdiv(2 * k, s), 16))
    tile_t = max(tile_lo, (tile_t // 16) * 16)

    blk_a = tile_t * s
    nt = _cdiv(t_out, tile_t)
    t_out_pad = nt * tile_t
    t_pad = (nt + 1) * blk_a                 # one spare block so the halo view is in range

    # ---- single shared replicate-padded input (b, t_pad, c) + tiny halo strips ----
    x_btc = jnp.transpose(x, (0, 2, 1)).astype(cdt)
    xp = jnp.pad(x_btc, ((0, 0), (k, t_pad - k - t), (0, 0)), mode='edge')
    xh = xp[:, blk_a:, :].reshape(b, nt, blk_a, c)[:, :, :halo, :]     # (b, nt, halo, c)

    # torch Conv1d (c_out, c_in, k) -> (k*c_in, c_out): row m*c_in + i <- w[o, i, m].
    wl_f = jnp.transpose(w_left, (2, 1, 0)).reshape(kc, c).astype(cdt)
    wr_f = jnp.transpose(w_right, (2, 1, 0)).reshape(kc, c).astype(cdt)

    grid = (b, nt)
    vmem_limit = int(min(max(2 * budget, 32 * 1024 * 1024),
                         vmem_cap - 2 * 1024 * 1024))
    cparams = pltpu.CompilerParams(
        dimension_semantics=("parallel", "parallel"),
        vmem_limit_bytes=vmem_limit)

    flops = 2 * b * t_out_pad * (2 * kc) * (n_out if fuse_lr else c)
    cost = pl.CostEstimate(
        flops=int(flops), transcendentals=0,
        bytes_accessed=int(xp.size * item + xh.size * item + w_bytes
                           + b * t_out_pad * n_out * out_item))

    a_spec = pl.BlockSpec((1, blk_a, c), lambda bi, ti: (bi, ti, 0))
    h_spec = pl.BlockSpec((1, 1, halo, c), lambda bi, ti: (bi, ti, 0, 0))
    o_spec = pl.BlockSpec((1, tile_t, n_out), lambda bi, ti: (bi, ti, 0))
    scratch = [pltpu.VMEM((blk_a + halo, c), cdt)]
    out_shape = jax.ShapeDtypeStruct((b, t_out_pad, n_out), out_dtype)

    # TODO(synk): weights are DMA'd once (constant index_map) but still get two VMEM
    # buffers; pipeline_mode=pl.Buffered(1) on the weight specs (and Buffered(3) on the
    # window spec if xprof shows exposed DMA) would reclaim that VMEM for bigger tiles.
    if fuse_lr:
        w = jnp.zeros((2 * kc, n_out), cdt)
        w = w.at[:kc, :c].set(wl_f).at[kc:, c:2 * c].set(wr_f)
        kernel = functools.partial(_lr_fused_kernel, blk_a=blk_a, k=k, s=s,
                                   tile_t=tile_t)
        out = pl.pallas_call(
            kernel, out_shape=out_shape, grid=grid,
            in_specs=[a_spec, h_spec,
                      pl.BlockSpec((2 * kc, n_out), lambda bi, ti: (0, 0))],
            out_specs=o_spec, scratch_shapes=scratch,
            compiler_params=cparams, cost_estimate=cost,
        )(xp, xh, w)
    else:
        kernel = functools.partial(_lr_split_kernel, blk_a=blk_a, k=k, s=s,
                                   tile_t=tile_t)
        out = pl.pallas_call(
            kernel, out_shape=out_shape, grid=grid,
            in_specs=[a_spec, h_spec,
                      pl.BlockSpec((kc, c), lambda bi, ti: (0, 0)),
                      pl.BlockSpec((kc, c), lambda bi, ti: (0, 0))],
            out_specs=o_spec, scratch_shapes=scratch,
            compiler_params=cparams, cost_estimate=cost,
        )(xp, xh, wl_f, wr_f)

    return out[:, :t_out, :2 * c]


def _reference(x, w_left, w_right, *, stride, kernel_size):
    """Pure-JAX re-implementation of the PyTorch forward (for checking)."""
    b, c, t = x.shape
    k, s = kernel_size, stride
    t_out = (t - 1) // s + 1
    xl = jnp.concatenate([jnp.repeat(x[:, :, :1], k, axis=2), x], axis=2)[:, :, :-1]
    xr = jnp.concatenate([x, jnp.repeat(x[:, :, -1:], k, axis=2)], axis=2)[:, :, 1:]

    def conv1d(xp_, w):
        outs = []
        for j in range(t_out):
            patch = xp_[:, :, j * s:j * s + k]                 # (b, c_in, k)
            outs.append(jnp.einsum('bik,oik->bo', patch, w))
        return jnp.stack(outs, axis=2)                         # (b, c_out, t_out)

    feats = jnp.concatenate([conv1d(xl, w_left), conv1d(xr, w_right)], axis=1)
    return jnp.transpose(feats, (0, 2, 1))                     # (b, t_out, 2c)


def _run_case(key, batch, dim, t, kernel_size, stride, compute_dtype, atol, rtol):
    kx, kl, kr = jax.random.split(key, 3)
    x = jax.random.normal(kx, (batch, dim, t), dtype=jnp.float32)
    w_left = jax.random.normal(kl, (dim, dim, kernel_size), dtype=jnp.float32) * 0.1
    w_right = jax.random.normal(kr, (dim, dim, kernel_size), dtype=jnp.float32) * 0.1

    fn = jax.jit(functools.partial(left_right_feature_extractor,
                                   stride=stride, kernel_size=kernel_size,
                                   compute_dtype=compute_dtype))
    out = jax.block_until_ready(fn(x, w_left, w_right))

    if jnp.dtype(compute_dtype) != jnp.dtype(jnp.float32):
        # Reference with the same input rounding as the low-precision compute path.
        xq = x.astype(compute_dtype).astype(jnp.float32)
        wlq = w_left.astype(compute_dtype).astype(jnp.float32)
        wrq = w_right.astype(compute_dtype).astype(jnp.float32)
    else:
        xq, wlq, wrq = x, w_left, w_right
    ref = _reference(xq, wlq, wrq, stride=stride, kernel_size=kernel_size)

    t_out = (t - 1) // stride + 1
    assert out.shape == (batch, t_out, 2 * dim), out.shape
    err = float(jnp.max(jnp.abs(out - ref)))
    assert jnp.allclose(out, ref, atol=atol, rtol=rtol), ("mismatch vs reference", err)


if __name__ == "__main__":
    key = jax.random.PRNGKey(0)
    k1, k2, k3 = jax.random.split(key, 3)
    # 1) tight float32 check of the in-kernel windowing / weight layout (fused path)
    _run_case(k1, batch=2, dim=32, t=16, kernel_size=4, stride=2,
              compute_dtype=jnp.float32, atol=2e-3, rtol=2e-3)
    # 2) default bf16 compute (MXU-native), fused block-diagonal left/right path
    _run_case(k2, batch=2, dim=32, t=16, kernel_size=4, stride=2,
              compute_dtype=jnp.bfloat16, atol=1e-2, rtol=1e-2)
    # 3) large c -> split two-matmul path on every TPU generation
    _run_case(k3, batch=2, dim=256, t=20, kernel_size=3, stride=2,
              compute_dtype=jnp.bfloat16, atol=1e-2, rtol=1e-2)
    print("KERNEL_OK")
</pallas_src>

<mosaic_0001>
module attributes {stable_mosaic.version = 11 : i64} {
  func.func @_lr_fused_kernel(%arg0: i32, %arg1: i32, %arg2: memref<1x32x32xf32, #tpu.memory_space<vmem>>, %arg3: memref<1x1x16x32xf32, #tpu.memory_space<vmem>>, %arg4: memref<256x128xf32, #tpu.memory_space<vmem>>, %arg5: memref<1x16x128xf32, #tpu.memory_space<vmem>>, %arg6: memref<48x32xf32, #tpu.memory_space<vmem>>) attributes {dimension_semantics = [#tpu.dimension_semantics<parallel>, #tpu.dimension_semantics<parallel>], iteration_bounds = array<i64: 2, 1>, scalar_prefetch = 0 : i64, scratch_operands = 1 : i64, tpu.core_type = #tpu.core_type<tc>, window_params = [{transform_indices = @transform_0, window_bounds = array<i64: 1, 32, 32>}, {transform_indices = @transform_1, window_bounds = array<i64: 1, 1, 16, 32>}, {pipeline_mode = #tpu.pipeline_mode<synchronous>, transform_indices = @transform_2, window_bounds = array<i64: 256, 128>}, {transform_indices = @transform_3, window_bounds = array<i64: 1, 16, 128>}]} {
    %c0 = arith.constant 0 : index
    %c0_0 = arith.constant 0 : index
    %c0_1 = arith.constant 0 : index
    %0 = vector.load %arg2[%c0, %c0_0, %c0_1] : memref<1x32x32xf32, #tpu.memory_space<vmem>>, vector<1x32x32xf32>
    %1 = vector.shape_cast %0 : vector<1x32x32xf32> to vector<32x32xf32>
    %c0_2 = arith.constant 0 : index
    %c0_3 = arith.constant 0 : index
    %2 = vector.load %arg6[%c0_2, %c0_3] : memref<48x32xf32, #tpu.memory_space<vmem>>, vector<32x32xf32>
    tpu.vector_store %arg6[%c0_2, %c0_3], %1 {strides = array<i32>} : memref<48x32xf32, #tpu.memory_space<vmem>>, vector<32x32xf32>,
    %c0_4 = arith.constant 0 : index
    %c0_5 = arith.constant 0 : index
    %c0_6 = arith.constant 0 : index
    %c0_7 = arith.constant 0 : index
    %3 = vector.load %arg3[%c0_4, %c0_5, %c0_6, %c0_7] : memref<1x1x16x32xf32, #tpu.memory_space<vmem>>, vector<1x1x16x32xf32>
    %4 = vector.shape_cast %3 : vector<1x1x16x32xf32> to vector<16x32xf32>
    %c32 = arith.constant 32 : index
    %c0_8 = arith.constant 0 : index
    %5 = vector.load %arg6[%c32, %c0_8] : memref<48x32xf32, #tpu.memory_space<vmem>>, vector<16x32xf32>
    tpu.vector_store %arg6[%c32, %c0_8], %4 {strides = array<i32>} : memref<48x32xf32, #tpu.memory_space<vmem>>, vector<16x32xf32>,
    %c0_9 = arith.constant 0 : index
    %c0_10 = arith.constant 0 : index
    %6 = tpu.strided_load %arg6[%c0_9, %c0_10] {strides = array<i32: 2, 1>} : memref<48x32xf32, #tpu.memory_space<vmem>>, vector<16x32xf32>
    %c1 = arith.constant 1 : index
    %c0_11 = arith.constant 0 : index
    %7 = tpu.strided_load %arg6[%c1, %c0_11] {strides = array<i32: 2, 1>} : memref<48x32xf32, #tpu.memory_space<vmem>>, vector<16x32xf32>
    %c2 = arith.constant 2 : index
    %c0_12 = arith.constant 0 : index
    %8 = tpu.strided_load %arg6[%c2, %c0_12] {strides = array<i32: 2, 1>} : memref<48x32xf32, #tpu.memory_space<vmem>>, vector<16x32xf32>
    %c3 = arith.constant 3 : index
    %c0_13 = arith.constant 0 : index
    %9 = tpu.strided_load %arg6[%c3, %c0_13] {strides = array<i32: 2, 1>} : memref<48x32xf32, #tpu.memory_space<vmem>>, vector<16x32xf32>
    %c5 = arith.constant 5 : index
    %c0_14 = arith.constant 0 : index
    %10 = tpu.strided_load %arg6[%c5, %c0_14] {strides = array<i32: 2, 1>} : memref<48x32xf32, #tpu.memory_space<vmem>>, vector<16x32xf32>
    %c6 = arith.constant 6 : index
    %c0_15 = arith.constant 0 : index
    %11 = tpu.strided_load %arg6[%c6, %c0_15] {strides = array<i32: 2, 1>} : memref<48x32xf32, #tpu.memory_space<vmem>>, vector<16x32xf32>
    %c7 = arith.constant 7 : index
    %c0_16 = arith.constant 0 : index
    %12 = tpu.strided_load %arg6[%c7, %c0_16] {strides = array<i32: 2, 1>} : memref<48x32xf32, #tpu.memory_space<vmem>>, vector<16x32xf32>
    %c8 = arith.constant 8 : index
    %c0_17 = arith.constant 0 : index
    %13 = tpu.strided_load %arg6[%c8, %c0_17] {strides = array<i32: 2, 1>} : memref<48x32xf32, #tpu.memory_space<vmem>>, vector<16x32xf32>
    %14 = tpu.concatenate %6, %7, %8, %9, %10, %11, %12, %13 in 1 : vector<16x32xf32>, vector<16x32xf32>, vector<16x32xf32>, vector<16x32xf32>, vector<16x32xf32>, vector<16x32xf32>, vector<16x32xf32>, vector<16x32xf32> -> vector<16x256xf32>
    %c0_18 = arith.constant 0 : index
    %c0_19 = arith.constant 0 : index
    %15 = vector.load %arg4[%c0_18, %c0_19] : memref<256x128xf32, #tpu.memory_space<vmem>>, vector<256x128xf32>
    %cst = arith.constant dense<0.000000e+00> : vector<16x128xf32>
    %16 = tpu.matmul %14, %15, %cst {dimension_numbers = #tpu.dot_dimension_numbers<[1], [0], [0], [1], [0, 0, 1, 1], [], []>} : vector<16x256xf32>, vector<256x128xf32>, vector<16x128xf32> -> vector<16x128xf32>
    %17 = vector.shape_cast %16 : vector<16x128xf32> to vector<1x16x128xf32>
    %c0_20 = arith.constant 0 : index
    %c0_21 = arith.constant 0 : index
    %c0_22 = arith.constant 0 : index
    %18 = vector.load %arg5[%c0_20, %c0_21, %c0_22] : memref<1x16x128xf32, #tpu.memory_space<vmem>>, vector<1x16x128xf32>
    tpu.vector_store %arg5[%c0_20, %c0_21, %c0_22], %17 {strides = array<i32>} : memref<1x16x128xf32, #tpu.memory_space<vmem>>, vector<1x16x128xf32>,
    return
  }
  func.func @transform_0(%arg0: i32, %arg1: i32) -> (i32, i32, i32) {
    %c0_i32 = arith.constant 0 : i32
    %c0_i32_0 = arith.constant 0 : i32
    return %arg0, %arg1, %c0_i32 : i32, i32, i32
  }
  func.func @transform_1(%arg0: i32, %arg1: i32) -> (i32, i32, i32, i32) {
    %c0_i32 = arith.constant 0 : i32
    %c0_i32_0 = arith.constant 0 : i32
    %c0_i32_1 = arith.constant 0 : i32
    return %arg0, %arg1, %c0_i32, %c0_i32_0 : i32, i32, i32, i32
  }
  func.func @transform_2(%arg0: i32, %arg1: i32) -> (i32, i32) {
    %c0_i32 = arith.constant 0 : i32
    %c0_i32_0 = arith.constant 0 : i32
    %c0_i32_1 = arith.constant 0 : i32
    return %c0_i32, %c0_i32_0 : i32, i32
  }
  func.func @transform_3(%arg0: i32, %arg1: i32) -> (i32, i32, i32) {
    %c0_i32 = arith.constant 0 : i32
    %c0_i32_0 = arith.constant 0 : i32
    return %arg0, %arg1, %c0_i32 : i32, i32, i32
  }
}

</mosaic_0001>

<llo_original>
// kernel: left_right_feature_extractor.1
$region0: #{left_right_feature_extractor.1}
  #allocation0 [shape = 'u32[]', space=smem, size = 0x4, offset = 0x4, fixed_abs, tag = 'smem constant byte address 0x4 - core index']
  #allocation1 [shape = 'u32[144,128]{1,0:T(1,128)}', space=vmem, size = 0x12000, scoped, tag = 'internal scratch']
  #allocation2 [shape = 'f32[48,32]{1,0:T(8,128)}', space=vmem, size = 0x6000, scoped, tag = 'scratch operand']
  %s0 = inlined_call_operand.vmem [shape: f32[2,64,32], index: 0, kind: input, shape index: {}]
  %s1 = inlined_call_operand.vmem [shape: f32[2,1,16,32], index: 1, kind: input, shape index: {}]
  %s2 = inlined_call_operand.vmem [shape: f32[256,128], index: 2, kind: input, shape index: {}]
  %s3 = inlined_call_operand.vmem [shape: f32[2,16,128], index: 3, kind: output, shape index: {}]
  %s4 = sld [smem:[#allocation0]]
  $region45: #{left_right_feature_extractor.1} parent=0
    _
  %s6 = ssub.s32 1, %s4
  %s7 = scalar_select 0, %s6, %s4
  loop: start=0, step=1, limit=4
  $region2: #{left_right_feature_extractor.1} parent=0 // loop_pre_header
    _
  $region3: #{left_right_feature_extractor.1} parent=0 // loop_header
    %s9 = sphi 0, %s13
    %p10 = scmp.ge.s32.totalorder %s9, 4
    %s16 = sphi 0, %s28
    %s17 = sphi 0, %s24
    %s18 = sphi 0, %s16
    %s19 = sphi 0, %s17
    %s20 = sphi 0, %s18
    %s21 = sphi 0, %s19
    %s33 = sphi 0, %s35
    %s36 = sphi 0, %s33
    %s37 = sphi 0, %s36
    %s53 = sphi 0, %s37
    %s61 = sphi 0, %s63
    %s64 = sphi 0, %s61
    %s65 = sphi 0, %s64
    %s81 = sphi 0, %s65
    %s85 = sphi 0, %s85
    %s87 = sphi 0, %s85
    %s88 = sphi 0, %s87
    %s102 = sphi 0, %s88
    %s110 = sphi 0, %s112
    %s113 = sphi 0, %s110
    %s114 = sphi 0, %s113
    %s130 = sphi 0, %s114
  $region4: #{left_right_feature_extractor.1} parent=0 // loop_header_branch
    %12 = sbr.rel (%p10) target = $region8
  $region5: #{left_right_feature_extractor.1} parent=0 // loop_body
    %s14 = ssub.s32 %s9, 1
    %s15 = ssub.s32 %s9, 2
    %s22 = sadd.s32 1, %s17
    %p23 = scmp.ge.s32.totalorder %s22, 1
    %s24 = scalar_select %p23, 0, %s22
    %s25 = sadd.s32 1, %s16
    %s26 = scalar_select %p23, %s25, %s16
    %p27 = scmp.ge.s32.totalorder %s26, 2
    %s28 = scalar_select %p27, 0, %s26
    %s29 = ssub.s32 %s16, %s28
    %s30 = ssub.s32 %s17, %s24
    %s31 = sor.u32 %s29, %s30
    %p32 = scmp.eq.s32.totalorder %s31, 0
    %s34 = sadd.s32 %s33, 1
    %s35 = scalar_select %p32, %s33, %s34
    %p38 = pneg %p32
    %p39 = scmp.eq.s32.totalorder %s9, 1
    %p40 = por %p38, %p39
    %p41 = scmp.ne.s32.totalorder %s33, %s36
    %p42 = scmp.eq.s32.totalorder %s9, 0
    %p43 = por %p41, %p42
    %p44 = scmp.ne.s32.totalorder %s33, %s36
    %p45 = scmp.eq.s32.totalorder %s14, 1
    %p46 = por %p44, %p45
    %p47 = scmp.ne.s32.totalorder %s36, %s37
    %p48 = scmp.eq.s32.totalorder %s14, 0
    %p49 = por %p47, %p48
    %p50 = scmp.ne.s32.totalorder %s36, %s37
    %p51 = scmp.eq.s32.totalorder %s15, 1
    %p52 = por %p50, %p51
    %p54 = scmp.ne.s32.totalorder %s37, %s53
    %p55 = scmp.eq.s32.totalorder %s15, 0
    %p56 = por %p54, %p55
    %s57 = ssub.s32 %s16, %s28
    %s58 = ssub.s32 %s17, %s24
    %s59 = sor.u32 %s57, %s58
    %p60 = scmp.eq.s32.totalorder %s59, 0
    %s62 = sadd.s32 %s61, 1
    %s63 = scalar_select %p60, %s61, %s62
    %p66 = pneg %p60
    %p67 = scmp.eq.s32.totalorder %s9, 1
    %p68 = por %p66, %p67
    %p69 = scmp.ne.s32.totalorder %s61, %s64
    %p70 = scmp.eq.s32.totalorder %s9, 0
    %p71 = por %p69, %p70
    %p72 = scmp.ne.s32.totalorder %s61, %s64
    %p73 = scmp.eq.s32.totalorder %s14, 1
    %p74 = por %p72, %p73
    %p75 = scmp.ne.s32.totalorder %s64, %s65
    %p76 = scmp.eq.s32.totalorder %s14, 0
    %p77 = por %p75, %p76
    %p78 = scmp.ne.s32.totalorder %s64, %s65
    %p79 = scmp.eq.s32.totalorder %s15, 1
    %p80 = por %p78, %p79
    %p82 = scmp.ne.s32.totalorder %s65, %s81
    %p83 = scmp.eq.s32.totalorder %s15, 0
    %p84 = por %p82, %p83
    %s86 = sadd.s32 %s85, 1
    %p89 = scmp.eq.s32.totalorder %s9, 1
    %p90 = scmp.ne.s32.totalorder %s85, %s87
    %p91 = scmp.eq.s32.totalorder %s9, 0
    %p92 = por %p90, %p91
    %p93 = scmp.ne.s32.totalorder %s85, %s87
    %p94 = scmp.eq.s32.totalorder %s14, 1
    %p95 = por %p93, %p94
    %p96 = scmp.ne.s32.totalorder %s87, %s88
    %p97 = scmp.eq.s32.totalorder %s14, 0
    %p98 = por %p96, %p97
    %p99 = scmp.ne.s32.totalorder %s87, %s88
    %p100 = scmp.eq.s32.totalorder %s15, 1
    %p101 = por %p99, %p100
    %p103 = scmp.ne.s32.totalorder %s88, %s102
    %p104 = scmp.eq.s32.totalorder %s15, 0
    %p105 = por %p103, %p104
    %s106 = ssub.s32 %s16, %s28
    %s107 = ssub.s32 %s17, %s24
    %s108 = sor.u32 %s106, %s107
    %p109 = scmp.eq.s32.totalorder %s108, 0
    %s111 = sadd.s32 %s110, 1
    %s112 = scalar_select %p109, %s110, %s111
    %p115 = pneg %p109
    %p116 = scmp.eq.s32.totalorder %s9, 1
    %p117 = por %p115, %p116
    %p118 = scmp.ne.s32.totalorder %s110, %s113
    %p119 = scmp.eq.s32.totalorder %s9, 0
    %p120 = por %p118, %p119
    %p121 = scmp.ne.s32.totalorder %s110, %s113
    %p122 = scmp.eq.s32.totalorder %s14, 1
    %p123 = por %p121, %p122
    %p124 = scmp.ne.s32.totalorder %s113, %s114
    %p125 = scmp.eq.s32.totalorder %s14, 0
    %p126 = por %p124, %p125
    %p127 = scmp.ne.s32.totalorder %s113, %s114
    %p128 = scmp.eq.s32.totalorder %s15, 1
    %p129 = por %p127, %p128
    %p131 = scmp.ne.s32.totalorder %s114, %s130
    %p132 = scmp.eq.s32.totalorder %s15, 0
    %p133 = por %p131, %p132
    %p134 = scmp.le.s32.totalorder 1, %s9
    %p135 = scmp.lt.s32.totalorder %s9, 3
    %p136 = pnand %p134, %p135
    %p137 = pneg %p136
    // Predicated region
    $region9: #{left_right_feature_extractor.1} parent=5 // pred_check
      _
    $region10: #{left_right_feature_extractor.1} parent=5 // pred_check_branch
      %139 = sbr.rel (%p136) target = $region12
    $region11: #{left_right_feature_extractor.1} parent=5 // pred_region
      %s140 = ssub.s32 %s9, 1
      // Predicated region
      $region13: #{left_right_feature_extractor.1} parent=11 // pred_check
        %p141 = pneg %p98
      $region14: #{left_right_feature_extractor.1} parent=11 // pred_check_branch
        %143 = sbr.rel (%p141) target = $region16
      $region15: #{left_right_feature_extractor.1} parent=11 // pred_region
        _
      $region16: #{left_right_feature_extractor.1} parent=11 // pred_fallthru
        _
    $region12: #{left_right_feature_extractor.1} parent=5 // pred_fallthru
      _
    %p144 = scmp.lt.s32.totalorder %s9, 2
    // Predicated region
    $region17: #{left_right_feature_extractor.1} parent=5 // pred_check
      %p145 = pneg %p144
    $region18: #{left_right_feature_extractor.1} parent=5 // pred_check_branch
      %147 = sbr.rel (%p145) target = $region20
    $region19: #{left_right_feature_extractor.1} parent=5 // pred_region
      // Predicated region
      $region21: #{left_right_feature_extractor.1} parent=19 // pred_check
        %p148 = pneg %p43
      $region22: #{left_right_feature_extractor.1} parent=19 // pred_check_branch
        %150 = sbr.rel (%p148) target = $region24
      $region23: #{left_right_feature_extractor.1} parent=19 // pred_region
        %s151 = smul.u32 4, %s17
        %p152 = scmp.lt.s32.totalorder %s16, 1
        %s153 = scalar_select %p152, %s16, 1
        %p154 = scmp.lt.s32.totalorder %s151, 7
        %s155 = scalar_select %p154, %s151, 7
        %s156 = smul.addr %s153, 8
        %s157 = sadd.s32 %s155, %s156
        %s158 = smul.addr %s157, 8
        %s159 = scalar_lea.vmem %s0, %s158
        %s160 = smul.u32 4, %s17
      $region24: #{left_right_feature_extractor.1} parent=19 // pred_fallthru
        _
      // Predicated region
      $region25: #{left_right_feature_extractor.1} parent=19 // pred_check
        %p161 = pneg %p71
      $region26: #{left_right_feature_extractor.1} parent=19 // pred_check_branch
        %163 = sbr.rel (%p161) target = $region28
      $region27: #{left_right_feature_extractor.1} parent=19 // pred_region
        %p164 = scmp.lt.s32.totalorder %s16, 1
        %s165 = scalar_select %p164, %s16, 1
        %p166 = scmp.lt.s32.totalorder %s17, 0
        %s167 = scalar_select %p166, %s17, 0
        %s168 = smul.addr %s167, 2
        %s169 = smul.addr %s165, 2
        %s170 = sadd.s32 %s168, %s169
        %s171 = smul.addr %s170, 8
        %s172 = scalar_lea.vmem %s1, %s171
      $region28: #{left_right_feature_extractor.1} parent=19 // pred_fallthru
        _
    $region20: #{left_right_feature_extractor.1} parent=5 // pred_fallthru
      _
    %p173 = scmp.le.s32.totalorder 1, %s9
    %p174 = scmp.lt.s32.totalorder %s9, 3
    %p175 = pnand %p173, %p174
    %p176 = pneg %p175
    // Predicated region
    $region29: #{left_right_feature_extractor.1} parent=5 // pred_check
      _
    $region30: #{left_right_feature_extractor.1} parent=5 // pred_check_branch
      %178 = sbr.rel (%p175) target = $region32
    $region31: #{left_right_feature_extractor.1} parent=5 // pred_region
      %s179 = ssub.s32 %s9, 1
      %s180 = smul.u32 4, %s19
      %p181 = scmp.lt.s32.totalorder %s18, 1
      %s182 = scalar_select %p181, %s18, 1
      %p183 = scmp.lt.s32.totalorder %s180, 7
      %s184 = scalar_select %p183, %s180, 7
      %s185 = smul.addr %s182, 8
      %s186 = sadd.s32 %s184, %s185
      %s187 = smul.addr %s186, 8
      %s188 = scalar_lea.vmem %s0, %s187
      %p189 = pneg %p49
      %p190 = pneg %p46
      %p191 = scmp.lt.s32.totalorder %s18, 1
      %s192 = scalar_select %p191, %s18, 1
      %p193 = scmp.lt.s32.totalorder %s19, 0
      %s194 = scalar_select %p193, %s19, 0
      %s195 = smul.addr %s194, 2
      %s196 = smul.addr %s192, 2
      %s197 = sadd.s32 %s195, %s196
      %s198 = smul.addr %s197, 8
      %s199 = scalar_lea.vmem %s1, %s198
      %p200 = pneg %p77
      %p201 = pneg %p74
      %p202 = pneg %p98
      %p203 = pneg %p95
      %p204 = pneg %p126
      %p205 = pneg %p123
      %s206 = smul.u32 2, %s19
      %p207 = scmp.lt.s32.totalorder %s18, 1
      %s208 = scalar_select %p207, %s18, 1
      %p209 = scmp.lt.s32.totalorder %s206, 1
      %s210 = scalar_select %p209, %s206, 1
      %s211 = smul.addr %s208, 2
      %s212 = sadd.s32 %s210, %s211
      %s213 = smul.addr %s212, 8
      %s214 = scalar_lea.vmem %s3, %s213
      %s215 = smul.u32 4, %s19
      %p216 = scmp.lt.s32.totalorder %s18, 1
      %s217 = scalar_select %p216, %s18, 1
      %p218 = scmp.lt.s32.totalorder %s215, 7
      %s219 = scalar_select %p218, %s215, 7
      %s220 = smul.addr %s217, 8
      %s221 = sadd.s32 %s219, %s220
      %s222 = smul.addr %s221, 8
      %s223 = scalar_lea.vmem %s0, %s222
      %s224 = smul.u32 4, %s19
      %p225 = scmp.lt.s32.totalorder %s18, 1
      %s226 = scalar_select %p225, %s18, 1
      %p227 = scmp.lt.s32.totalorder %s19, 0
      %s228 = scalar_select %p227, %s19, 0
      %s229 = smul.addr %s228, 2
      %s230 = smul.addr %s226, 2
      %s231 = sadd.s32 %s229, %s230
      %s232 = smul.addr %s231, 8
      %s233 = scalar_lea.vmem %s1, %s232
      %s234 = smul.u32 2, %s19
      %p235 = scmp.lt.s32.totalorder %s18, 1
      %s236 = scalar_select %p235, %s18, 1
      %p237 = scmp.lt.s32.totalorder %s234, 1
      %s238 = scalar_select %p237, %s234, 1
      %s239 = smul.addr %s236, 2
      %s240 = sadd.s32 %s238, %s239
      %s241 = smul.addr %s240, 8
      %s242 = scalar_lea.vmem %s3, %s241
      %s243 = smul.u32 2, %s19
      %v244 = vld [vmem:[%s223] sm:$0xff]
      %v245 = vld [vmem:[%s223 + $0x8] sm:$0xff]
      %v246 = vld [vmem:[%s223 + $0x10] sm:$0xff]
      %v247 = vld [vmem:[%s223 + $0x18] sm:$0xff]
      %vm248 = vcmask 261120
      %249 = vst.msk [vmem:[#allocation2] sm:$0xff] %vm248, %v244
      %250 = vst.msk [vmem:[#allocation2 + $0x8] sm:$0xff] %vm248, %v245
      %251 = vst.msk [vmem:[#allocation2 + $0x10] sm:$0xff] %vm248, %v246
      %252 = vst.msk [vmem:[#allocation2 + $0x18] sm:$0xff] %vm248, %v247
      %v253 = vld [vmem:[%s233] sm:$0xff]
      %v254 = vld [vmem:[%s233 + $0x8] sm:$0xff]
      %255 = vst.msk [vmem:[#allocation2 + $0x20] sm:$0xff] %vm248, %v253
      %256 = vst.msk [vmem:[#allocation2 + $0x28] sm:$0xff] %vm248, %v254
      %v257 = vld [vmem:[#allocation2] ss:$2 sm:$0xff]
      %s258 = scalar_lea.vmem [#allocation2], 16
      %v259 = vld [vmem:[%s258] ss:$2 sm:$0xff]
      %s260 = scalar_lea.vmem [#allocation2], 1
      %v261 = vld [vmem:[%s260] ss:$2 sm:$0xff]
      %s262 = scalar_lea.vmem [#allocation2], 17
      %v263 = vld [vmem:[%s262] ss:$2 sm:$0xff]
      %s264 = scalar_lea.vmem [#allocation2], 2
      %v265 = vld [vmem:[%s264] ss:$2 sm:$0xff]
      %s266 = scalar_lea.vmem [#allocation2], 18
      %v267 = vld [vmem:[%s266] ss:$2 sm:$0xff]
      %s268 = scalar_lea.vmem [#allocation2], 3
      %v269 = vld [vmem:[%s268] ss:$2 sm:$0xff]
      %s270 = scalar_lea.vmem [#allocation2], 19
      %v271 = vld [vmem:[%s270] ss:$2 sm:$0xff]
      %s272 = scalar_lea.vmem [#allocation2], 5
      %v273 = vld [vmem:[%s272] ss:$2 sm:$0xff]
      %s274 = scalar_lea.vmem [#allocation2], 21
      %v275 = vld [vmem:[%s274] ss:$2 sm:$0xff]
      %s276 = scalar_lea.vmem [#allocation2], 6
      %v277 = vld [vmem:[%s276] ss:$2 sm:$0xff]
      %s278 = scalar_lea.vmem [#allocation2], 22
      %v279 = vld [vmem:[%s278] ss:$2 sm:$0xff]
      %s280 = scalar_lea.vmem [#allocation2], 7
      %v281 = vld [vmem:[%s280] ss:$2 sm:$0xff]
      %s282 = scalar_lea.vmem [#allocation2], 23
      %v283 = vld [vmem:[%s282] ss:$2 sm:$0xff]
      %s284 = scalar_lea.vmem [#allocation2], 8
      %v285 = vld [vmem:[%s284] ss:$2 sm:$0xff]
      %s286 = scalar_lea.vmem [#allocation2], 24
      %v287 = vld [vmem:[%s286] ss:$2 sm:$0xff]
      %290 = vrot.lane.b32.xlu0 %v261, 32
      %v291 = vpop.permute.xlu0 %290
      %292 = vrot.lane.b32.xlu0 %v263, 32
      %v293 = vpop.permute.xlu0 %292
      %298 = vrot.lane.b32.xlu0 %v265, 64
      %v299 = vpop.permute.xlu0 %298
      %300 = vrot.lane.b32.xlu0 %v267, 64
      %v301 = vpop.permute.xlu0 %300
      %306 = vrot.lane.b32.xlu0 %v269, 96
      %v307 = vpop.permute.xlu0 %306
      %308 = vrot.lane.b32.xlu0 %v271, 96
      %v309 = vpop.permute.xlu0 %308
      %314 = vrot.lane.b32.xlu0 %v277, 32
      %v315 = vpop.permute.xlu0 %314
      %316 = vrot.lane.b32.xlu0 %v279, 32
      %v317 = vpop.permute.xlu0 %316
      %322 = vrot.lane.b32.xlu0 %v281, 64
      %v323 = vpop.permute.xlu0 %322
      %324 = vrot.lane.b32.xlu0 %v283, 64
      %v325 = vpop.permute.xlu0 %324
      %330 = vrot.lane.b32.xlu0 %v285, 96
      %v331 = vpop.permute.xlu0 %330
      %332 = vrot.lane.b32.xlu0 %v287, 96
      %v333 = vpop.permute.xlu0 %332
      %v336 = vsel %vm248, %v257, %v291
      %v337 = vsel %vm248, %v259, %v293
      %vm338 = vcmask 523264
      %v339 = vsel %vm338, %v336, %v299
      %v340 = vsel %vm338, %v337, %v301
      %vm341 = vcmask 785408
      %v342 = vsel %vm341, %v339, %v307
      %v343 = vsel %vm341, %v340, %v309
      %v344 = vsel %vm248, %v273, %v315
      %v345 = vsel %vm248, %v275, %v317
      %v346 = vsel %vm338, %v344, %v323
      %v347 = vsel %vm338, %v345, %v325
      %v348 = vsel %vm341, %v346, %v331
      %v349 = vsel %vm341, %v347, %v333
      %v350 = vld [vmem:[%s2] sm:$0xff]
      %v351 = vld [vmem:[%s2 + $0x8] sm:$0xff]
      %v352 = vld [vmem:[%s2 + $0x10] sm:$0xff]
      %v353 = vld [vmem:[%s2 + $0x18] sm:$0xff]
      %v354 = vld [vmem:[%s2 + $0x20] sm:$0xff]
      %v355 = vld [vmem:[%s2 + $0x28] sm:$0xff]
      %v356 = vld [vmem:[%s2 + $0x30] sm:$0xff]
      %v357 = vld [vmem:[%s2 + $0x38] sm:$0xff]
      %v358 = vld [vmem:[%s2 + $0x40] sm:$0xff]
      %v359 = vld [vmem:[%s2 + $0x48] sm:$0xff]
      %v360 = vld [vmem:[%s2 + $0x50] sm:$0xff]
      %v361 = vld [vmem:[%s2 + $0x58] sm:$0xff]
      %v362 = vld [vmem:[%s2 + $0x60] sm:$0xff]
      %v363 = vld [vmem:[%s2 + $0x68] sm:$0xff]
      %v364 = vld [vmem:[%s2 + $0x70] sm:$0xff]
      %v365 = vld [vmem:[%s2 + $0x78] sm:$0xff]
      %v366 = vld [vmem:[%s2 + $0x80] sm:$0xff]
      %v367 = vld [vmem:[%s2 + $0x88] sm:$0xff]
      %v368 = vld [vmem:[%s2 + $0x90] sm:$0xff]
      %v369 = vld [vmem:[%s2 + $0x98] sm:$0xff]
      %v370 = vld [vmem:[%s2 + $0xa0] sm:$0xff]
      %v371 = vld [vmem:[%s2 + $0xa8] sm:$0xff]
      %v372 = vld [vmem:[%s2 + $0xb0] sm:$0xff]
      %v373 = vld [vmem:[%s2 + $0xb8] sm:$0xff]
      %v374 = vld [vmem:[%s2 + $0xc0] sm:$0xff]
      %v375 = vld [vmem:[%s2 + $0xc8] sm:$0xff]
      %v376 = vld [vmem:[%s2 + $0xd0] sm:$0xff]
      %v377 = vld [vmem:[%s2 + $0xd8] sm:$0xff]
      %v378 = vld [vmem:[%s2 + $0xe0] sm:$0xff]
      %v379 = vld [vmem:[%s2 + $0xe8] sm:$0xff]
      %v380 = vld [vmem:[%s2 + $0xf0] sm:$0xff]
      %v381 = vld [vmem:[%s2 + $0xf8] sm:$0xff]
      %382 = vmatprep.subr.mxu0 0.0
      %383 = vmatpush1.msra.mxu0 %v350
      %384 = vmatprep.subr.mxu0 0.0
      %385 = vmatpush1.msra.mxu0 %v351
      %386 = vmatprep.subr.mxu0 0.0
      %387 = vmatpush1.msra.mxu0 %v352
      %388 = vmatprep.subr.mxu0 0.0
      %389 = vmatpush1.msra.mxu0 %v353
      %390 = vmatprep.subr.mxu0 0.0
      %391 = vmatpush1.msra.mxu0 %v354
      %392 = vmatprep.subr.mxu0 0.0
      %393 = vmatpush1.msra.mxu0 %v355
      %394 = vmatprep.subr.mxu0 0.0
      %395 = vmatpush1.msra.mxu0 %v356
      %396 = vmatprep.subr.mxu0 0.0
      %397 = vmatpush1.msra.mxu0 %v357
      %398 = vmatprep.subr.mxu0 0.0
      %399 = vmatpush1.msra.mxu0 %v358
      %400 = vmatprep.subr.mxu0 0.0
      %401 = vmatpush1.msra.mxu0 %v359
      %402 = vmatprep.subr.mxu0 0.0
      %403 = vmatpush1.msra.mxu0 %v360
      %404 = vmatprep.subr.mxu0 0.0
      %405 = vmatpush1.msra.mxu0 %v361
      %406 = vmatprep.subr.mxu0 0.0
      %407 = vmatpush1.msra.mxu0 %v362
      %408 = vmatprep.subr.mxu0 0.0
      %409 = vmatpush1.msra.mxu0 %v363
      %410 = vmatprep.subr.mxu0 0.0
      %411 = vmatpush1.msra.mxu0 %v364
      %412 = vmatprep.subr.mxu0 0.0
      %413 = vmatpush1.msra.mxu0 %v365
      %414 = vmatprep.subr.mxu0 0.0
      %415 = vmatpush1.msra.mxu0 %v366
      %416 = vmatprep.subr.mxu0 0.0
      %417 = vmatpush1.msra.mxu0 %v367
      %418 = vmatprep.subr.mxu0 0.0
      %419 = vmatpush1.msra.mxu0 %v368
      %420 = vmatprep.subr.mxu0 0.0
      %421 = vmatpush1.msra.mxu0 %v369
      %422 = vmatprep.subr.mxu0 0.0
      %423 = vmatpush1.msra.mxu0 %v370
      %424 = vmatprep.subr.mxu0 0.0
      %425 = vmatpush1.msra.mxu0 %v371
      %426 = vmatprep.subr.mxu0 0.0
      %427 = vmatpush1.msra.mxu0 %v372
      %428 = vmatprep.subr.mxu0 0.0
      %429 = vmatpush1.msra.mxu0 %v373
      %430 = vmatprep.subr.mxu0 0.0
      %431 = vmatpush1.msra.mxu0 %v374
      %432 = vmatprep.subr.mxu0 0.0
      %433 = vmatpush1.msra.mxu0 %v375
      %434 = vmatprep.subr.mxu0 0.0
      %435 = vmatpush1.msra.mxu0 %v376
      %436 = vmatprep.subr.mxu0 0.0
      %437 = vmatpush1.msra.mxu0 %v377
      %438 = vmatprep.subr.mxu0 0.0
      %439 = vmatpush1.msra.mxu0 %v378
      %440 = vmatprep.subr.mxu0 0.0
      %441 = vmatpush1.msra.mxu0 %v379
      %442 = vmatprep.subr.mxu0 0.0
      %443 = vmatpush1.msra.mxu0 %v380
      %444 = vmatprep.subr.mxu0 0.0
      %445 = vmatpush1.msra.mxu0 %v381
      %446 = vmatprep.mubr.f32.mxu0 %v348
      %447 = vmatmul.mubr.f32.gmra.mrb[0].mxu0 %v342
      %v448 = vpop.f32.mrb[0].mxu0
      %v449 = vadd.f32 0.0, %v448
      %v450 = vpop.f32.mrb[0].mxu0
      %451 = vmatprep.mubr.f32.mxu0 %v349
      %452 = vmatmul.mubr.f32.gmra.mrb[0].mxu0 %v343
      %v453 = vpop.f32.mrb[0].mxu0
      %v454 = vadd.f32 0.0, %v453
      %v455 = vpop.f32.mrb[0].mxu0
      %456 = vdwg.mxu0
      %457 = vst [vmem:[%s242] sm:$0xff] %v449
      %458 = vst [vmem:[%s242 + $0x8] sm:$0xff] %v454
      %s459 = smul.u32 2, %s19
      %p460 = scmp.lt.s32.totalorder %s18, 1
      %s461 = scalar_select %p460, %s18, 1
      %p462 = scmp.lt.s32.totalorder %s459, 1
      %s463 = scalar_select %p462, %s459, 1
      %s464 = smul.addr %s461, 2
      %s465 = sadd.s32 %s463, %s464
      %s466 = smul.addr %s465, 8
      %s467 = scalar_lea.vmem %s3, %s466
      // Predicated region
      $region33: #{left_right_feature_extractor.1} parent=31 // pred_check
        %p468 = pneg %p123
      $region34: #{left_right_feature_extractor.1} parent=31 // pred_check_branch
        %470 = sbr.rel (%p468) target = $region36
      $region35: #{left_right_feature_extractor.1} parent=31 // pred_region
        %s471 = smul.u32 2, %s19
      $region36: #{left_right_feature_extractor.1} parent=31 // pred_fallthru
        _
    $region32: #{left_right_feature_extractor.1} parent=5 // pred_fallthru
      _
    %p472 = scmp.le.s32.totalorder 2, %s9
    // Predicated region
    $region37: #{left_right_feature_extractor.1} parent=5 // pred_check
      %p473 = pneg %p472
    $region38: #{left_right_feature_extractor.1} parent=5 // pred_check_branch
      %475 = sbr.rel (%p473) target = $region40
    $region39: #{left_right_feature_extractor.1} parent=5 // pred_region
      %s476 = ssub.s32 %s9, 2
      // Predicated region
      $region41: #{left_right_feature_extractor.1} parent=39 // pred_check
        %p477 = pneg %p129
      $region42: #{left_right_feature_extractor.1} parent=39 // pred_check_branch
        %479 = sbr.rel (%p477) target = $region44
      $region43: #{left_right_feature_extractor.1} parent=39 // pred_region
        %s480 = smul.u32 2, %s21
        %p481 = scmp.lt.s32.totalorder %s20, 1
        %s482 = scalar_select %p481, %s20, 1
        %p483 = scmp.lt.s32.totalorder %s480, 1
        %s484 = scalar_select %p483, %s480, 1
        %s485 = smul.addr %s482, 2
        %s486 = sadd.s32 %s484, %s485
        %s487 = smul.addr %s486, 8
        %s488 = scalar_lea.vmem %s3, %s487
      $region44: #{left_right_feature_extractor.1} parent=39 // pred_fallthru
        _
    $region40: #{left_right_feature_extractor.1} parent=5 // pred_fallthru
      _
  $region6: #{left_right_feature_extractor.1} parent=0 // loop_footer
    %s13 = sadd.s32 1, %s9
  $region7: #{left_right_feature_extractor.1} parent=0 // loop_footer_branch
    %8 = sbr.rel target = $region3
  $region8: #{left_right_feature_extractor.1} parent=0 // loop_exit
    _

</llo_original>
